<compile_context>
chip_gen: v6e
topology: v6e:2x2x1
jax: 0.10.0
libtpu: 0.0.40
codegen_flags: <defaults>
</compile_context>

<pallas_src>
import jax
import jax.numpy as jnp
from jax import lax
from jax.experimental import pallas as pl
from jax.experimental.pallas import tpu as pltpu

PADDING_ID = -100
_LANE = 128


def _token_stats_kernel(logits_ref, ids_ref, w8_ref, emb_ref):
    x = logits_ref[...].astype(jnp.float32)              # (TR, V) f32 compute
    ids = ids_ref[...]                                    # (TR, 1) int32 (cleaned)
    tr, v = x.shape

    # softmax statistics on the unnormalized exponentials
    m = jnp.max(x, axis=-1, keepdims=True)                 # XLU reduce
    z = x - m
    ez = jnp.exp(z)                                        # EUP
    sum_ez = jnp.sum(ez, axis=-1, keepdims=True)           # XLU reduce
    sum_ez_z = jnp.sum(ez * z, axis=-1, keepdims=True)     # XLU reduce

    # label gather: only use of the full-width iota (x/z dead after this)
    iota_v = lax.broadcasted_iota(jnp.int32, (tr, v), 1)
    ez_label = jnp.sum(jnp.where(iota_v == ids, ez, 0.0),
                       axis=-1, keepdims=True)

    lse = jnp.log(sum_ez)                                  # EUP
    inv = 1.0 / sum_ez                                     # exact divide (accuracy)
    entropy = lse - sum_ez_z * inv                         # (TR, 1)
    prob_label = ez_label * inv                            # (TR, 1)

    # ---- top-5 of probs == top-5 of ez (monotonic); scale by inv at the end.
    if v % _LANE == 0 and v > _LANE:
        # Stage 1: sweep lane blocks keeping a per-lane running top-5 via a
        # compare/select insertion network (5 max + 5 min per 128-wide block).
        nb = v // _LANE
        tops = [jnp.zeros((tr, _LANE), jnp.float32) for _ in range(5)]
        for j in range(nb):
            c = ez[:, j * _LANE:(j + 1) * _LANE]           # static, lane-aligned
            for r in range(5):
                hi = jnp.maximum(tops[r], c)
                c = jnp.minimum(tops[r], c)
                tops[r] = hi
        slab = jnp.concatenate(tops, axis=-1)              # (TR, 5*128)
    else:
        slab = ez                                          # small / ragged V fallback

    sw = slab.shape[-1]
    iota_s = lax.broadcasted_iota(jnp.int32, (tr, sw), 1)
    stats = [prob_label, entropy]
    working = slab                                         # values in [0, 1]
    for _ in range(5):
        top_v = jnp.max(working, axis=-1, keepdims=True)   # XLU
        stats.append(top_v * inv)
        # mask exactly one occurrence (first index) so duplicate values are
        # kept, matching torch.topk(...).values; reuses top_v (no argmax).
        idx = jnp.min(jnp.where(working == top_v, iota_s, sw),
                      axis=-1, keepdims=True)
        working = jnp.where(iota_s == idx, -1.0, working)

    # pack the 7 stats plus a constant-1 column (bias carrier) into (TR, 8)
    # and run the linear layer on the MXU: (TR, 8) @ (8, E).
    cols = lax.broadcasted_iota(jnp.int32, (tr, 8), 1)
    smat = jnp.ones((tr, 8), jnp.float32)                  # column 7 stays 1.0
    for k in range(7):
        smat = jnp.where(cols == k, stats[k], smat)

    emb_ref[...] = jnp.dot(smat, w8_ref[...],
                           preferred_element_type=jnp.float32
                           ).astype(emb_ref.dtype)


def _per_core_vmem_bytes():
    cap = 64 * 1024 * 1024
    try:
        cap = int(pltpu.get_tpu_info().vmem_capacity_bytes)
    except Exception:
        pass
    try:
        kind = jax.devices()[0].device_kind.lower()
        if "v7" in kind:
            cap = min(cap, 64 * 1024 * 1024)   # 64 MiB per TensorCore on v7x
    except Exception:
        pass
    return cap


def _choose_tile_rows(V, N, E, vmem_budget, in_dtype_bytes):
    # bf16 packs 2 rows per sublane -> 16-row alignment; 8 for f32.
    align = 16 if in_dtype_bytes < 4 else 8
    per_row = (2 * V * in_dtype_bytes        # double-buffered logits block
               + 5 * V * 4                   # live (rows, V) f32 temporaries
               + 2 * E * 4                   # double-buffered output block
               + 8 * 1024)                   # slab / iotas / stats / smat slack
    rows = (vmem_budget // 2) // max(per_row, 1)
    rows = min(rows, 1024)
    # keep at least 2 grid steps so the parallel axis shards across v7x's 2 TCs
    rows = min(rows, max(pl.cdiv(N, 2), align))
    rows = max(align, (rows // align) * align)
    return int(rows), int(per_row)


def token_statistics_embedding(logits, labels, weight, bias, *, tile_rows=None):
    """logits: (B, S, V) f32 or bf16 (prefer bf16 from the producer on v5e),
       labels: (B, S) int, weight: (E, 7) f32 (torch nn.Linear layout),
       bias: (E,) f32.
       Returns (embedding (B, S, E) f32, attention_mask_decoder (B, S) int32)."""
    B, S, V = logits.shape
    E = weight.shape[0]
    N = B * S
    assert V >= 5, "top-5 statistics require a vocabulary of at least 5"

    in_bytes = jnp.dtype(logits.dtype).itemsize
    vmem_cap = _per_core_vmem_bytes()
    rows, per_row = _choose_tile_rows(V, N, E, vmem_cap, in_bytes)
    if tile_rows is not None:
        rows = int(tile_rows)

    # NOTE: logits containing -inf (masked vocab) yield NaN entropy — identical
    # to the PyTorch reference, not a kernel regression.
    logits2 = logits.reshape(N, V)                          # native dtype (bf16 ok)
    ids2 = (labels * (labels != PADDING_ID)).astype(jnp.int32).reshape(N, 1)

    # combined (8, E) weight: rows 0..6 = W^T, row 7 = bias (matches the
    # constant-1 eighth stat column in the kernel).
    w8 = jnp.zeros((8, E), jnp.float32)
    w8 = w8.at[:7, :].set(weight.T.astype(jnp.float32))
    w8 = w8.at[7, :].set(bias.astype(jnp.float32))

    grid = (pl.cdiv(N, rows),)                              # partial last block is
    vmem_limit = min(vmem_cap,                              # write-masked by Pallas
                     max(32 * 1024 * 1024,
                         int(rows * per_row * 1.25) + (1 << 20)))

    emb = pl.pallas_call(
        _token_stats_kernel,
        out_shape=jax.ShapeDtypeStruct((N, E), jnp.float32),
        grid_spec=pltpu.PrefetchScalarGridSpec(
            num_scalar_prefetch=0,
            grid=grid,
            in_specs=[
                pl.BlockSpec((rows, V), lambda i: (i, 0)),
                pl.BlockSpec((rows, 1), lambda i: (i, 0)),
                pl.BlockSpec((8, E), lambda i: (0, 0)),
            ],
            out_specs=pl.BlockSpec((rows, E), lambda i: (i, 0)),
        ),
        compiler_params=pltpu.CompilerParams(
            dimension_semantics=("parallel",),
            vmem_limit_bytes=vmem_limit,
        ),
    )(logits2, ids2, w8)

    emb = emb.reshape(B, S, E)
    attention_mask_decoder = (labels != PADDING_ID).astype(jnp.int32)
    return emb, attention_mask_decoder


def _reference(logits, labels, weight, bias):
    """Pure-JAX reference of logits_to_statistics + nn.Linear."""
    hyp_ids = (labels * (labels != PADDING_ID)).astype(jnp.int32)
    log_probs = jax.nn.log_softmax(logits.astype(jnp.float32), axis=-1)
    probs_all = jnp.exp(log_probs)
    entropy = -jnp.sum(log_probs * probs_all, axis=-1, keepdims=True)
    probs = jnp.take_along_axis(probs_all, hyp_ids[..., None], axis=-1)
    top5 = lax.top_k(probs_all, 5)[0]
    stats = jnp.concatenate([probs, entropy, top5], axis=-1)
    emb = stats @ weight.T + bias
    mask = (labels != PADDING_ID).astype(jnp.int32)
    return emb, mask


if __name__ == "__main__":
    # small synthetic shapes consistent with the module's forward
    B, S, V, E = 2, 8, 128, 32

    key = jax.random.PRNGKey(0)
    k_logits, k_labels, k_w, k_b, k_l2, k_i2, k_l3, k_i3 = jax.random.split(key, 8)

    logits = jax.random.normal(k_logits, (B, S, V), dtype=jnp.float32) * 2.0
    labels = jax.random.randint(k_labels, (B, S), 0, V, dtype=jnp.int32)
    labels = labels.at[0, -2:].set(PADDING_ID)   # some padded positions

    # deterministic nn.Linear(7, E) parameters
    bound = 1.0 / jnp.sqrt(7.0)
    weight = jax.random.uniform(k_w, (E, 7), jnp.float32, -bound, bound)
    bias = jax.random.uniform(k_b, (E,), jnp.float32, -bound, bound)

    # 1) f32 logits path
    emb, mask = token_statistics_embedding(logits, labels, weight, bias)
    emb = jax.block_until_ready(emb)
    ref_emb, ref_mask = _reference(logits, labels, weight, bias)
    assert emb.shape == (B, S, E) and mask.shape == (B, S)
    assert jnp.allclose(emb, ref_emb, atol=1e-4, rtol=1e-4)
    assert jnp.array_equal(mask, ref_mask)

    # 2) bf16 logits path (halved HBM read traffic on v5e)
    logits_bf16 = logits.astype(jnp.bfloat16)
    emb_b, mask_b = token_statistics_embedding(logits_bf16, labels, weight, bias)
    emb_b = jax.block_until_ready(emb_b)
    ref_emb_b, _ = _reference(logits_bf16, labels, weight, bias)
    assert jnp.allclose(emb_b, ref_emb_b, atol=1e-4, rtol=1e-4)
    assert jnp.array_equal(mask_b, ref_mask)

    # 3) ragged row count: partial last grid block (no wrapper-side padding)
    emb_o, mask_o = token_statistics_embedding(logits[:, :5], labels[:, :5],
                                               weight, bias)
    emb_o = jax.block_until_ready(emb_o)
    ref_emb_o, ref_mask_o = _reference(logits[:, :5], labels[:, :5], weight, bias)
    assert jnp.allclose(emb_o, ref_emb_o, atol=1e-4, rtol=1e-4)
    assert jnp.array_equal(mask_o, ref_mask_o)

    # 4) V a multiple of 128 (> 128): two-stage top-5 sweep, duplicate-heavy
    V2 = 384
    logits2 = jnp.floor(jax.random.uniform(k_l2, (B, S, V2), jnp.float32) * 4.0)
    labels2 = jax.random.randint(k_i2, (B, S), 0, V2, dtype=jnp.int32)
    labels2 = labels2.at[1, :2].set(PADDING_ID)
    emb2, mask2 = token_statistics_embedding(logits2, labels2, weight, bias)
    emb2 = jax.block_until_ready(emb2)
    ref_emb2, ref_mask2 = _reference(logits2, labels2, weight, bias)
    assert jnp.allclose(emb2, ref_emb2, atol=1e-4, rtol=1e-4)
    assert jnp.array_equal(mask2, ref_mask2)

    # 5) ragged V (not a multiple of 128): full-width fallback top-5 path
    V3 = 200
    logits3 = jax.random.normal(k_l3, (B, S, V3), dtype=jnp.float32)
    labels3 = jax.random.randint(k_i3, (B, S), 0, V3, dtype=jnp.int32)
    emb3, mask3 = token_statistics_embedding(logits3, labels3, weight, bias)
    emb3 = jax.block_until_ready(emb3)
    ref_emb3, ref_mask3 = _reference(logits3, labels3, weight, bias)
    assert jnp.allclose(emb3, ref_emb3, atol=1e-4, rtol=1e-4)
    assert jnp.array_equal(mask3, ref_mask3)

    print("KERNEL_OK")
</pallas_src>

<mosaic_0001>
module attributes {stable_mosaic.version = 11 : i64} {
  func.func @_token_stats_kernel(%arg0: i32, %arg1: memref<8x128xf32, #tpu.memory_space<vmem>>, %arg2: memref<8x1xi32, #tpu.memory_space<vmem>>, %arg3: memref<8x32xf32, #tpu.memory_space<vmem>>, %arg4: memref<8x32xf32, #tpu.memory_space<vmem>>) attributes {dimension_semantics = [#tpu.dimension_semantics<parallel>], iteration_bounds = array<i64: 2>, scalar_prefetch = 0 : i64, scratch_operands = 0 : i64, tpu.core_type = #tpu.core_type<tc>, window_params = [{transform_indices = @transform_0, window_bounds = array<i64: 8, 128>}, {transform_indices = @transform_1, window_bounds = array<i64: 8, 1>}, {pipeline_mode = #tpu.pipeline_mode<synchronous>, transform_indices = @transform_2, window_bounds = array<i64: 8, 32>}, {transform_indices = @transform_3, window_bounds = array<i64: 8, 32>}]} {
    %c0 = arith.constant 0 : index
    %c0_0 = arith.constant 0 : index
    %0 = vector.load %arg1[%c0, %c0_0] : memref<8x128xf32, #tpu.memory_space<vmem>>, vector<8x128xf32>
    %c0_1 = arith.constant 0 : index
    %c0_2 = arith.constant 0 : index
    %1 = vector.load %arg2[%c0_1, %c0_2] : memref<8x1xi32, #tpu.memory_space<vmem>>, vector<8x1xi32>
    %cst = arith.constant dense<0xFF800000> : vector<8xf32>
    %2 = vector.multi_reduction <maximumf>, %0, %cst [1] : vector<8x128xf32> to vector<8xf32>
    %3 = vector.shape_cast %2 : vector<8xf32> to vector<8x1xf32>
    %4 = vector.broadcast %3 : vector<8x1xf32> to vector<8x128xf32>
    %5 = arith.subf %0, %4 : vector<8x128xf32>
    %6 = math.exp %5 : vector<8x128xf32>
    %cst_3 = arith.constant dense<0.000000e+00> : vector<8xf32>
    %7 = vector.multi_reduction <add>, %6, %cst_3 [1] : vector<8x128xf32> to vector<8xf32>
    %8 = vector.shape_cast %7 : vector<8xf32> to vector<8x1xf32>
    %9 = arith.mulf %6, %5 : vector<8x128xf32>
    %cst_4 = arith.constant dense<0.000000e+00> : vector<8xf32>
    %10 = vector.multi_reduction <add>, %9, %cst_4 [1] : vector<8x128xf32> to vector<8xf32>
    %11 = vector.shape_cast %10 : vector<8xf32> to vector<8x1xf32>
    %12 = tpu.iota {dimensions = array<i32: 1>} : vector<8x128xi32>
    %13 = vector.broadcast %1 : vector<8x1xi32> to vector<8x128xi32>
    %14 = arith.cmpi eq, %12, %13 : vector<8x128xi32>
    %cst_5 = arith.constant 0.000000e+00 : f32
    %15 = vector.broadcast %cst_5 : f32 to vector<8x128xf32>
    %16 = arith.select %14, %6, %15 : vector<8x128xi1>, vector<8x128xf32>
    %cst_6 = arith.constant dense<0.000000e+00> : vector<8xf32>
    %17 = vector.multi_reduction <add>, %16, %cst_6 [1] : vector<8x128xf32> to vector<8xf32>
    %18 = vector.shape_cast %17 : vector<8xf32> to vector<8x1xf32>
    %19 = math.log %8 : vector<8x1xf32>
    %cst_7 = arith.constant 1.000000e+00 : f32
    %20 = vector.broadcast %cst_7 : f32 to vector<8x1xf32>
    %21 = arith.divf %20, %8 : vector<8x1xf32>
    %22 = arith.mulf %11, %21 : vector<8x1xf32>
    %23 = arith.subf %19, %22 : vector<8x1xf32>
    %24 = arith.mulf %18, %21 : vector<8x1xf32>
    %25 = tpu.iota {dimensions = array<i32: 1>} : vector<8x128xi32>
    %cst_8 = arith.constant dense<0xFF800000> : vector<8xf32>
    %26 = vector.multi_reduction <maximumf>, %6, %cst_8 [1] : vector<8x128xf32> to vector<8xf32>
    %27 = vector.shape_cast %26 : vector<8xf32> to vector<8x1xf32>
    %28 = arith.mulf %27, %21 : vector<8x1xf32>
    %29 = vector.broadcast %27 : vector<8x1xf32> to vector<8x128xf32>
    %30 = arith.cmpf oeq, %6, %29 : vector<8x128xf32>
    %c128_i32 = arith.constant 128 : i32
    %31 = vector.broadcast %c128_i32 : i32 to vector<8x128xi32>
    %32 = arith.select %30, %25, %31 : vector<8x128xi1>, vector<8x128xi32>
    %cst_9 = arith.constant dense<2147483647> : vector<8xi32>
    %33 = vector.multi_reduction <minsi>, %32, %cst_9 [1] : vector<8x128xi32> to vector<8xi32>
    %34 = vector.shape_cast %33 : vector<8xi32> to vector<8x1xi32>
    %35 = vector.broadcast %34 : vector<8x1xi32> to vector<8x128xi32>
    %36 = arith.cmpi eq, %25, %35 : vector<8x128xi32>
    %cst_10 = arith.constant -1.000000e+00 : f32
    %37 = vector.broadcast %cst_10 : f32 to vector<8x128xf32>
    %38 = arith.select %36, %37, %6 : vector<8x128xi1>, vector<8x128xf32>
    %cst_11 = arith.constant dense<0xFF800000> : vector<8xf32>
    %39 = vector.multi_reduction <maximumf>, %38, %cst_11 [1] : vector<8x128xf32> to vector<8xf32>
    %40 = vector.shape_cast %39 : vector<8xf32> to vector<8x1xf32>
    %41 = arith.mulf %40, %21 : vector<8x1xf32>
    %42 = vector.broadcast %40 : vector<8x1xf32> to vector<8x128xf32>
    %43 = arith.cmpf oeq, %38, %42 : vector<8x128xf32>
    %c128_i32_12 = arith.constant 128 : i32
    %44 = vector.broadcast %c128_i32_12 : i32 to vector<8x128xi32>
    %45 = arith.select %43, %25, %44 : vector<8x128xi1>, vector<8x128xi32>
    %cst_13 = arith.constant dense<2147483647> : vector<8xi32>
    %46 = vector.multi_reduction <minsi>, %45, %cst_13 [1] : vector<8x128xi32> to vector<8xi32>
    %47 = vector.shape_cast %46 : vector<8xi32> to vector<8x1xi32>
    %48 = vector.broadcast %47 : vector<8x1xi32> to vector<8x128xi32>
    %49 = arith.cmpi eq, %25, %48 : vector<8x128xi32>
    %cst_14 = arith.constant -1.000000e+00 : f32
    %50 = vector.broadcast %cst_14 : f32 to vector<8x128xf32>
    %51 = arith.select %49, %50, %38 : vector<8x128xi1>, vector<8x128xf32>
    %cst_15 = arith.constant dense<0xFF800000> : vector<8xf32>
    %52 = vector.multi_reduction <maximumf>, %51, %cst_15 [1] : vector<8x128xf32> to vector<8xf32>
    %53 = vector.shape_cast %52 : vector<8xf32> to vector<8x1xf32>
    %54 = arith.mulf %53, %21 : vector<8x1xf32>
    %55 = vector.broadcast %53 : vector<8x1xf32> to vector<8x128xf32>
    %56 = arith.cmpf oeq, %51, %55 : vector<8x128xf32>
    %c128_i32_16 = arith.constant 128 : i32
    %57 = vector.broadcast %c128_i32_16 : i32 to vector<8x128xi32>
    %58 = arith.select %56, %25, %57 : vector<8x128xi1>, vector<8x128xi32>
    %cst_17 = arith.constant dense<2147483647> : vector<8xi32>
    %59 = vector.multi_reduction <minsi>, %58, %cst_17 [1] : vector<8x128xi32> to vector<8xi32>
    %60 = vector.shape_cast %59 : vector<8xi32> to vector<8x1xi32>
    %61 = vector.broadcast %60 : vector<8x1xi32> to vector<8x128xi32>
    %62 = arith.cmpi eq, %25, %61 : vector<8x128xi32>
    %cst_18 = arith.constant -1.000000e+00 : f32
    %63 = vector.broadcast %cst_18 : f32 to vector<8x128xf32>
    %64 = arith.select %62, %63, %51 : vector<8x128xi1>, vector<8x128xf32>
    %cst_19 = arith.constant dense<0xFF800000> : vector<8xf32>
    %65 = vector.multi_reduction <maximumf>, %64, %cst_19 [1] : vector<8x128xf32> to vector<8xf32>
    %66 = vector.shape_cast %65 : vector<8xf32> to vector<8x1xf32>
    %67 = arith.mulf %66, %21 : vector<8x1xf32>
    %68 = vector.broadcast %66 : vector<8x1xf32> to vector<8x128xf32>
    %69 = arith.cmpf oeq, %64, %68 : vector<8x128xf32>
    %c128_i32_20 = arith.constant 128 : i32
    %70 = vector.broadcast %c128_i32_20 : i32 to vector<8x128xi32>
    %71 = arith.select %69, %25, %70 : vector<8x128xi1>, vector<8x128xi32>
    %cst_21 = arith.constant dense<2147483647> : vector<8xi32>
    %72 = vector.multi_reduction <minsi>, %71, %cst_21 [1] : vector<8x128xi32> to vector<8xi32>
    %73 = vector.shape_cast %72 : vector<8xi32> to vector<8x1xi32>
    %74 = vector.broadcast %73 : vector<8x1xi32> to vector<8x128xi32>
    %75 = arith.cmpi eq, %25, %74 : vector<8x128xi32>
    %cst_22 = arith.constant -1.000000e+00 : f32
    %76 = vector.broadcast %cst_22 : f32 to vector<8x128xf32>
    %77 = arith.select %75, %76, %64 : vector<8x128xi1>, vector<8x128xf32>
    %cst_23 = arith.constant dense<0xFF800000> : vector<8xf32>
    %78 = vector.multi_reduction <maximumf>, %77, %cst_23 [1] : vector<8x128xf32> to vector<8xf32>
    %79 = vector.shape_cast %78 : vector<8xf32> to vector<8x1xf32>
    %80 = arith.mulf %79, %21 : vector<8x1xf32>
    %81 = tpu.iota {dimensions = array<i32: 1>} : vector<8x8xi32>
    %cst_24 = arith.constant 1.000000e+00 : f32
    %82 = vector.broadcast %cst_24 : f32 to vector<8x8xf32>
    %c0_i32 = arith.constant 0 : i32
    %83 = vector.broadcast %c0_i32 : i32 to vector<8x8xi32>
    %84 = arith.cmpi eq, %81, %83 : vector<8x8xi32>
    %85 = vector.shape_cast %24 : vector<8x1xf32> to vector<8x1xf32>
    %86 = vector.broadcast %85 : vector<8x1xf32> to vector<8x8xf32>
    %87 = arith.select %84, %86, %82 : vector<8x8xi1>, vector<8x8xf32>
    %c1_i32 = arith.constant 1 : i32
    %88 = vector.broadcast %c1_i32 : i32 to vector<8x8xi32>
    %89 = arith.cmpi eq, %81, %88 : vector<8x8xi32>
    %90 = vector.shape_cast %23 : vector<8x1xf32> to vector<8x1xf32>
    %91 = vector.broadcast %90 : vector<8x1xf32> to vector<8x8xf32>
    %92 = arith.select %89, %91, %87 : vector<8x8xi1>, vector<8x8xf32>
    %c2_i32 = arith.constant 2 : i32
    %93 = vector.broadcast %c2_i32 : i32 to vector<8x8xi32>
    %94 = arith.cmpi eq, %81, %93 : vector<8x8xi32>
    %95 = vector.shape_cast %28 : vector<8x1xf32> to vector<8x1xf32>
    %96 = vector.broadcast %95 : vector<8x1xf32> to vector<8x8xf32>
    %97 = arith.select %94, %96, %92 : vector<8x8xi1>, vector<8x8xf32>
    %c3_i32 = arith.constant 3 : i32
    %98 = vector.broadcast %c3_i32 : i32 to vector<8x8xi32>
    %99 = arith.cmpi eq, %81, %98 : vector<8x8xi32>
    %100 = vector.shape_cast %41 : vector<8x1xf32> to vector<8x1xf32>
    %101 = vector.broadcast %100 : vector<8x1xf32> to vector<8x8xf32>
    %102 = arith.select %99, %101, %97 : vector<8x8xi1>, vector<8x8xf32>
    %c4_i32 = arith.constant 4 : i32
    %103 = vector.broadcast %c4_i32 : i32 to vector<8x8xi32>
    %104 = arith.cmpi eq, %81, %103 : vector<8x8xi32>
    %105 = vector.shape_cast %54 : vector<8x1xf32> to vector<8x1xf32>
    %106 = vector.broadcast %105 : vector<8x1xf32> to vector<8x8xf32>
    %107 = arith.select %104, %106, %102 : vector<8x8xi1>, vector<8x8xf32>
    %c5_i32 = arith.constant 5 : i32
    %108 = vector.broadcast %c5_i32 : i32 to vector<8x8xi32>
    %109 = arith.cmpi eq, %81, %108 : vector<8x8xi32>
    %110 = vector.shape_cast %67 : vector<8x1xf32> to vector<8x1xf32>
    %111 = vector.broadcast %110 : vector<8x1xf32> to vector<8x8xf32>
    %112 = arith.select %109, %111, %107 : vector<8x8xi1>, vector<8x8xf32>
    %c6_i32 = arith.constant 6 : i32
    %113 = vector.broadcast %c6_i32 : i32 to vector<8x8xi32>
    %114 = arith.cmpi eq, %81, %113 : vector<8x8xi32>
    %115 = vector.shape_cast %80 : vector<8x1xf32> to vector<8x1xf32>
    %116 = vector.broadcast %115 : vector<8x1xf32> to vector<8x8xf32>
    %117 = arith.select %114, %116, %112 : vector<8x8xi1>, vector<8x8xf32>
    %c0_25 = arith.constant 0 : index
    %c0_26 = arith.constant 0 : index
    %118 = vector.load %arg3[%c0_25, %c0_26] : memref<8x32xf32, #tpu.memory_space<vmem>>, vector<8x32xf32>
    %cst_27 = arith.constant dense<0.000000e+00> : vector<8x32xf32>
    %119 = tpu.matmul %117, %118, %cst_27 {dimension_numbers = #tpu.dot_dimension_numbers<[1], [0], [0], [1], [0, 0, 1, 1], [], []>} : vector<8x8xf32>, vector<8x32xf32>, vector<8x32xf32> -> vector<8x32xf32>
    %c0_28 = arith.constant 0 : index
    %c0_29 = arith.constant 0 : index
    %120 = vector.load %arg4[%c0_28, %c0_29] : memref<8x32xf32, #tpu.memory_space<vmem>>, vector<8x32xf32>
    tpu.vector_store %arg4[%c0_28, %c0_29], %119 {strides = array<i32>} : memref<8x32xf32, #tpu.memory_space<vmem>>, vector<8x32xf32>,
    return
  }
  func.func @transform_0(%arg0: i32) -> (i32, i32) {
    %c0_i32 = arith.constant 0 : i32
    %c0_i32_0 = arith.constant 0 : i32
    return %arg0, %c0_i32 : i32, i32
  }
  func.func @transform_1(%arg0: i32) -> (i32, i32) {
    %c0_i32 = arith.constant 0 : i32
    %c0_i32_0 = arith.constant 0 : i32
    return %arg0, %c0_i32 : i32, i32
  }
  func.func @transform_2(%arg0: i32) -> (i32, i32) {
    %c0_i32 = arith.constant 0 : i32
    %c0_i32_0 = arith.constant 0 : i32
    %c0_i32_1 = arith.constant 0 : i32
    return %c0_i32, %c0_i32_0 : i32, i32
  }
  func.func @transform_3(%arg0: i32) -> (i32, i32) {
    %c0_i32 = arith.constant 0 : i32
    %c0_i32_0 = arith.constant 0 : i32
    return %arg0, %c0_i32 : i32, i32
  }
}

</mosaic_0001>

<llo_original>
// kernel: tpu_custom_call.1
$region0: #{tpu_custom_call.1}
  #allocation0 [shape = 'u32[]', space=smem, size = 0x4, offset = 0x4, fixed_abs, tag = 'smem constant byte address 0x4 - core index']
  #allocation1 [shape = 'u32[144,128]{1,0:T(1,128)}', space=vmem, size = 0x12000, scoped, tag = 'internal scratch']
  %s0 = inlined_call_operand.vmem [shape: f32[16,128], index: 0, kind: input, shape index: {}]
  %s1 = inlined_call_operand.vmem [shape: s32[16,1], index: 1, kind: input, shape index: {}]
  %s2 = inlined_call_operand.hbm [shape: f32[8,32], index: 2, kind: input, shape index: {}]
  %s3 = inlined_call_operand.hbm [shape: f32[16,32], index: 3, kind: output, shape index: {}]
  %s4 = sld [smem:[#allocation0]]
  $region49: #{tpu_custom_call.1} parent=0
    _
  %s6 = ssub.s32 1, %s4
  %s7 = scalar_select 0, %s6, %s4
  $region1: #{tpu_custom_call.1} parent=0
    #allocation2 [shape = 'u8[4096]{0}', space=vmem, size = 0x1000, scoped, tag = 'input window, operand 2, single buffered']
    #allocation3 [shape = 's32[2]{0}', space=sflag, size = 0x8, scoped, tag = 'scoped memory for tpu_custom_call.1']
    #allocation4 [shape = 's32[2]{0}', space=sflag, size = 0x8, scoped, tag = 'scoped memory for tpu_custom_call.1']
    #allocation5 [shape = 'u8[8192]{0}', space=vmem, size = 0x2000, scoped, tag = 'output window, operand 0']
    %8 = vsyncpa [#allocation3], 0
    %9 = vsyncpa [#allocation4], 0
    %s10 = scalar_lea.sflag [#allocation4], 1
    %11 = vsyncpa %s10, 0
    loop: start=0, step=1, limit=4
    $region2: #{tpu_custom_call.1} parent=1 // loop_pre_header
      _
    $region3: #{tpu_custom_call.1} parent=1 // loop_header
      %s13 = sphi 0, %s17
      %p14 = scmp.ge.s32.totalorder %s13, 4
      %s23 = sphi 0, %s25
      %s26 = sphi 0, %s23
      %s27 = sphi 0, %s26
      %s43 = sphi 0, %s27
      %s49 = sphi 0, %s51
      %s52 = sphi 0, %s49
      %s53 = sphi 0, %s52
      %s69 = sphi 0, %s53
      %s73 = sphi 0, %s73
      %s75 = sphi 0, %s73
      %s76 = sphi 0, %s75
      %s90 = sphi 0, %s76
      %s96 = sphi 0, %s98
      %s99 = sphi 0, %s96
      %s100 = sphi 0, %s99
      %s116 = sphi 0, %s100
    $region4: #{tpu_custom_call.1} parent=1 // loop_header_branch
      %16 = sbr.rel (%p14) target = $region8
    $region5: #{tpu_custom_call.1} parent=1 // loop_body
      %s18 = ssub.s32 %s13, 1
      %s19 = ssub.s32 %s13, 2
      %s20 = sadd.s32 %s13, 1
      %s21 = ssub.s32 %s13, %s20
      %p22 = scmp.eq.s32.totalorder %s21, 0
      %s24 = sadd.s32 %s23, 1
      %s25 = scalar_select %p22, %s23, %s24
      %p28 = pneg %p22
      %p29 = scmp.eq.s32.totalorder %s13, 1
      %p30 = por %p28, %p29
      %p31 = scmp.ne.s32.totalorder %s23, %s26
      %p32 = scmp.eq.s32.totalorder %s13, 0
      %p33 = por %p31, %p32
      %p34 = scmp.ne.s32.totalorder %s23, %s26
      %p35 = scmp.eq.s32.totalorder %s18, 1
      %p36 = por %p34, %p35
      %p37 = scmp.ne.s32.totalorder %s26, %s27
      %p38 = scmp.eq.s32.totalorder %s18, 0
      %p39 = por %p37, %p38
      %p40 = scmp.ne.s32.totalorder %s26, %s27
      %p41 = scmp.eq.s32.totalorder %s19, 1
      %p42 = por %p40, %p41
      %p44 = scmp.ne.s32.totalorder %s27, %s43
      %p45 = scmp.eq.s32.totalorder %s19, 0
      %p46 = por %p44, %p45
      %s47 = ssub.s32 %s13, %s20
      %p48 = scmp.eq.s32.totalorder %s47, 0
      %s50 = sadd.s32 %s49, 1
      %s51 = scalar_select %p48, %s49, %s50
      %p54 = pneg %p48
      %p55 = scmp.eq.s32.totalorder %s13, 1
      %p56 = por %p54, %p55
      %p57 = scmp.ne.s32.totalorder %s49, %s52
      %p58 = scmp.eq.s32.totalorder %s13, 0
      %p59 = por %p57, %p58
      %p60 = scmp.ne.s32.totalorder %s49, %s52
      %p61 = scmp.eq.s32.totalorder %s18, 1
      %p62 = por %p60, %p61
      %p63 = scmp.ne.s32.totalorder %s52, %s53
      %p64 = scmp.eq.s32.totalorder %s18, 0
      %p65 = por %p63, %p64
      %p66 = scmp.ne.s32.totalorder %s52, %s53
      %p67 = scmp.eq.s32.totalorder %s19, 1
      %p68 = por %p66, %p67
      %p70 = scmp.ne.s32.totalorder %s53, %s69
      %p71 = scmp.eq.s32.totalorder %s19, 0
      %p72 = por %p70, %p71
      %s74 = sadd.s32 %s73, 1
      %p77 = scmp.eq.s32.totalorder %s13, 1
      %p78 = scmp.ne.s32.totalorder %s73, %s75
      %p79 = scmp.eq.s32.totalorder %s13, 0
      %p80 = por %p78, %p79
      %p81 = scmp.ne.s32.totalorder %s73, %s75
      %p82 = scmp.eq.s32.totalorder %s18, 1
      %p83 = por %p81, %p82
      %p84 = scmp.ne.s32.totalorder %s75, %s76
      %p85 = scmp.eq.s32.totalorder %s18, 0
      %p86 = por %p84, %p85
      %p87 = scmp.ne.s32.totalorder %s75, %s76
      %p88 = scmp.eq.s32.totalorder %s19, 1
      %p89 = por %p87, %p88
      %p91 = scmp.ne.s32.totalorder %s76, %s90
      %p92 = scmp.eq.s32.totalorder %s19, 0
      %p93 = por %p91, %p92
      %s94 = ssub.s32 %s13, %s20
      %p95 = scmp.eq.s32.totalorder %s94, 0
      %s97 = sadd.s32 %s96, 1
      %s98 = scalar_select %p95, %s96, %s97
      %p101 = pneg %p95
      %p102 = scmp.eq.s32.totalorder %s13, 1
      %p103 = por %p101, %p102
      %p104 = scmp.ne.s32.totalorder %s96, %s99
      %p105 = scmp.eq.s32.totalorder %s13, 0
      %p106 = por %p104, %p105
      %p107 = scmp.ne.s32.totalorder %s96, %s99
      %p108 = scmp.eq.s32.totalorder %s18, 1
      %p109 = por %p107, %p108
      %p110 = scmp.ne.s32.totalorder %s99, %s100
      %p111 = scmp.eq.s32.totalorder %s18, 0
      %p112 = por %p110, %p111
      %p113 = scmp.ne.s32.totalorder %s99, %s100
      %p114 = scmp.eq.s32.totalorder %s19, 1
      %p115 = por %p113, %p114
      %p117 = scmp.ne.s32.totalorder %s100, %s116
      %p118 = scmp.eq.s32.totalorder %s19, 0
      %p119 = por %p117, %p118
      %p120 = scmp.le.s32.totalorder 1, %s13
      %p121 = scmp.lt.s32.totalorder %s13, 3
      %p122 = pnand %p120, %p121
      %p123 = pneg %p122
      // Predicated region
      $region9: #{tpu_custom_call.1} parent=5 // pred_check
        _
      $region10: #{tpu_custom_call.1} parent=5 // pred_check_branch
        %125 = sbr.rel (%p122) target = $region12
      $region11: #{tpu_custom_call.1} parent=5 // pred_region
        %s126 = ssub.s32 %s13, 1
        // Predicated region
        $region13: #{tpu_custom_call.1} parent=11 // pred_check
          %p127 = pneg %p86
        $region14: #{tpu_custom_call.1} parent=11 // pred_check_branch
          %129 = sbr.rel (%p127) target = $region16
        $region15: #{tpu_custom_call.1} parent=11 // pred_region
          %s131 = ssub.s32 128, 128
          %132 = vsyncadd [#allocation3], %s131
          %s134 = sshll.u32 [#allocation2], 4
          %s135 = int_to_ptr.vmem [resolvable:$true] %s134
          %137 = dma.hbm_to_vmem [thread:$0]  %s2, 128, %s135, [#allocation3]
        $region16: #{tpu_custom_call.1} parent=11 // pred_fallthru
          _
      $region12: #{tpu_custom_call.1} parent=5 // pred_fallthru
        _
      %p138 = scmp.lt.s32.totalorder %s13, 2
      // Predicated region
      $region17: #{tpu_custom_call.1} parent=5 // pred_check
        %p139 = pneg %p138
      $region18: #{tpu_custom_call.1} parent=5 // pred_check_branch
        %141 = sbr.rel (%p139) target = $region20
      $region19: #{tpu_custom_call.1} parent=5 // pred_region
        // Predicated region
        $region21: #{tpu_custom_call.1} parent=19 // pred_check
          %p142 = pneg %p33
        $region22: #{tpu_custom_call.1} parent=19 // pred_check_branch
          %144 = sbr.rel (%p142) target = $region24
        $region23: #{tpu_custom_call.1} parent=19 // pred_region
          %p145 = scmp.lt.s32.totalorder %s13, 1
          %s146 = scalar_select %p145, %s13, 1
          %s147 = smul.addr %s146, 8
          %s148 = scalar_lea.vmem %s0, %s147
        $region24: #{tpu_custom_call.1} parent=19 // pred_fallthru
          _
        // Predicated region
        $region25: #{tpu_custom_call.1} parent=19 // pred_check
          %p149 = pneg %p59
        $region26: #{tpu_custom_call.1} parent=19 // pred_check_branch
          %151 = sbr.rel (%p149) target = $region28
        $region27: #{tpu_custom_call.1} parent=19 // pred_region
          %p152 = scmp.lt.s32.totalorder %s13, 1
          %s153 = scalar_select %p152, %s13, 1
          %s154 = smul.addr %s153, 8
          %s155 = scalar_lea.vmem %s1, %s154
        $region28: #{tpu_custom_call.1} parent=19 // pred_fallthru
          _
      $region20: #{tpu_custom_call.1} parent=5 // pred_fallthru
        _
      %p156 = scmp.le.s32.totalorder 1, %s13
      %p157 = scmp.lt.s32.totalorder %s13, 3
      %p158 = pnand %p156, %p157
      %p159 = pneg %p158
      // Predicated region
      $region29: #{tpu_custom_call.1} parent=5 // pred_check
        _
      $region30: #{tpu_custom_call.1} parent=5 // pred_check_branch
        %161 = sbr.rel (%p158) target = $region32
      $region31: #{tpu_custom_call.1} parent=5 // pred_region
        %s162 = ssub.s32 %s13, 1
        // Predicated region
        $region33: #{tpu_custom_call.1} parent=31 // pred_check
          %p163 = pneg %p86
        $region34: #{tpu_custom_call.1} parent=31 // pred_check_branch
          %165 = sbr.rel (%p163) target = $region36
        $region35: #{tpu_custom_call.1} parent=31 // pred_region
          %166 = dma.done [#allocation3], 128
        $region36: #{tpu_custom_call.1} parent=31 // pred_fallthru
          _
        %p167 = scmp.lt.s32.totalorder %s18, 1
        %s168 = scalar_select %p167, %s18, 1
        %s169 = smul.addr %s168, 8
        %s170 = scalar_lea.vmem %s0, %s169
        %p171 = pneg %p39
        %p172 = pneg %p36
        %p173 = scmp.lt.s32.totalorder %s18, 1
        %s174 = scalar_select %p173, %s18, 1
        %s175 = smul.addr %s174, 8
        %s176 = scalar_lea.vmem %s1, %s175
        %p177 = pneg %p65
        %p178 = pneg %p62
        %p179 = pneg %p86
        %p180 = pneg %p83
        %p181 = pneg %p112
        %p182 = pneg %p109
        %s183 = sand.u32 %s99, 1
        %s184 = scalar_lea.sflag [#allocation4], %s183
        %s185 = sand.u32 %s99, 1
        %s186 = smul.addr %s185, 8
        %s187 = scalar_lea.vmem [#allocation5], %s186
        %p188 = scmp.lt.s32.totalorder %s18, 1
        %s189 = scalar_select %p188, %s18, 1
        %s190 = smul.addr %s189, 8
        %s191 = scalar_lea.vmem %s0, %s190
        %p192 = scmp.lt.s32.totalorder %s18, 1
        %s193 = scalar_select %p192, %s18, 1
        %s194 = smul.addr %s193, 8
        %s195 = scalar_lea.vmem %s1, %s194
        %v196 = vld [vmem:[%s191] sm:$0xff]
        %v197 = vld [vmem:[%s195] sm:$0xff]
        %198 = vmax.xlane.f32.xlu0 %v196
        %v199 = vpop.xlane.xlu0 %198
        %v200 = vsub.f32 %v196, %v199
        %v201 = vmul.f32 %v200, 1.442695
        %v202 = vpow.pop %v201
        %203 = vadd.xlane.f32.xlu0 %v202
        %v204 = vpop.xlane.xlu0 %203
        %v205 = vmul.f32 %v202, %v200
        %206 = vadd.xlane.f32.xlu0 %v205
        %v207 = vpop.xlane.xlu0 %206
        %v208 = vlaneseq
        %v209 = vand.u32 %v208, 127
        %210 = vset.pattern.permute.xlu0 0
        %211 = vperm.xlu0 %210, %v197
        %v212 = vpop.permute.xlu0 %211
        %vm213 = vcmp.eq.s32.totalorder %v209, %v212
        %v214 = vsel %vm213, %v202, 0.0
        %215 = vadd.xlane.f32.xlu0 %v214
        %v216 = vpop.xlane.xlu0 %215
        %v217 = vlog2.pop %v204
        %v218 = vmul.f32 %v217, 0.6931472
        %v219 = vrcp.pop %v204
        %v220 = vmul.f32 1.0, %v219
        %v221 = vmul.f32 %v207, %v220
        %v222 = vsub.f32 %v218, %v221
        %v223 = vmul.f32 %v216, %v220
        %224 = vmax.xlane.f32.xlu0 %v202
        %v225 = vpop.xlane.xlu0 %224
        %v226 = vmul.f32 %v225, %v220
        %vm227 = vcmp.eq.f32.partialorder %v202, %v225
        %v228 = vsel %vm227, %v209, 128
        %v229 = vand.u32 %v228, 65535
        %v230 = vshra.s32 %v228, 16
        %v231 = vcvt.s32.f32 %v229
        %v232 = vcvt.s32.f32 %v230
        %233 = vmin.xlane.f32.xlu0 %v232
        %v234 = vpop.xlane.xlu0 %233
        %vm235 = vcmp.eq.f32.partialorder %v232, %v234
        %v236 = vsel %vm235, %v231, inf
        %237 = vmin.xlane.f32.xlu0 %v236
        %v238 = vpop.xlane.xlu0 %237
        %v239 = vcvt.f32.s32 %v238
        %v240 = vcvt.f32.s32 %v234
        %v241 = vshll.u32 %v240, 16
        %v242 = vadd.s32 %v241, %v239
        %vm243 = vcmp.eq.s32.totalorder %v209, %v242
        %v244 = vsel %vm243, -1.0, %v202
        %245 = vmax.xlane.f32.xlu0 %v244
        %v246 = vpop.xlane.xlu0 %245
        %v247 = vmul.f32 %v246, %v220
        %vm248 = vcmp.eq.f32.partialorder %v244, %v246
        %v249 = vsel %vm248, %v209, 128
        %v250 = vand.u32 %v249, 65535
        %v251 = vshra.s32 %v249, 16
        %v252 = vcvt.s32.f32 %v250
        %v253 = vcvt.s32.f32 %v251
        %254 = vmin.xlane.f32.xlu0 %v253
        %v255 = vpop.xlane.xlu0 %254
        %vm256 = vcmp.eq.f32.partialorder %v253, %v255
        %v257 = vsel %vm256, %v252, inf
        %258 = vmin.xlane.f32.xlu0 %v257
        %v259 = vpop.xlane.xlu0 %258
        %v260 = vcvt.f32.s32 %v259
        %v261 = vcvt.f32.s32 %v255
        %v262 = vshll.u32 %v261, 16
        %v263 = vadd.s32 %v262, %v260
        %vm264 = vcmp.eq.s32.totalorder %v209, %v263
        %v265 = vsel %vm264, -1.0, %v244
        %266 = vmax.xlane.f32.xlu0 %v265
        %v267 = vpop.xlane.xlu0 %266
        %v268 = vmul.f32 %v267, %v220
        %vm269 = vcmp.eq.f32.partialorder %v265, %v267
        %v270 = vsel %vm269, %v209, 128
        %v271 = vand.u32 %v270, 65535
        %v272 = vshra.s32 %v270, 16
        %v273 = vcvt.s32.f32 %v271
        %v274 = vcvt.s32.f32 %v272
        %275 = vmin.xlane.f32.xlu0 %v274
        %v276 = vpop.xlane.xlu0 %275
        %vm277 = vcmp.eq.f32.partialorder %v274, %v276
        %v278 = vsel %vm277, %v273, inf
        %279 = vmin.xlane.f32.xlu0 %v278
        %v280 = vpop.xlane.xlu0 %279
        %v281 = vcvt.f32.s32 %v280
        %v282 = vcvt.f32.s32 %v276
        %v283 = vshll.u32 %v282, 16
        %v284 = vadd.s32 %v283, %v281
        %vm285 = vcmp.eq.s32.totalorder %v209, %v284
        %v286 = vsel %vm285, -1.0, %v265
        %287 = vmax.xlane.f32.xlu0 %v286
        %v288 = vpop.xlane.xlu0 %287
        %v289 = vmul.f32 %v288, %v220
        %vm290 = vcmp.eq.f32.partialorder %v286, %v288
        %v291 = vsel %vm290, %v209, 128
        %v292 = vand.u32 %v291, 65535
        %v293 = vshra.s32 %v291, 16
        %v294 = vcvt.s32.f32 %v292
        %v295 = vcvt.s32.f32 %v293
        %296 = vmin.xlane.f32.xlu0 %v295
        %v297 = vpop.xlane.xlu0 %296
        %vm298 = vcmp.eq.f32.partialorder %v295, %v297
        %v299 = vsel %vm298, %v294, inf
        %300 = vmin.xlane.f32.xlu0 %v299
        %v301 = vpop.xlane.xlu0 %300
        %v302 = vcvt.f32.s32 %v301
        %v303 = vcvt.f32.s32 %v297
        %v304 = vshll.u32 %v303, 16
        %v305 = vadd.s32 %v304, %v302
        %vm306 = vcmp.eq.s32.totalorder %v209, %v305
        %v307 = vsel %vm306, -1.0, %v286
        %308 = vmax.xlane.f32.xlu0 %v307
        %v309 = vpop.xlane.xlu0 %308
        %v310 = vmul.f32 %v309, %v220
        %vm311 = vcmp.eq.s32.totalorder %v209, 0
        %v312 = vsel %vm311, %v223, 1.0
        %vm313 = vcmp.eq.s32.totalorder %v209, 1
        %v314 = vsel %vm313, %v222, %v312
        %vm315 = vcmp.eq.s32.totalorder %v209, 2
        %v316 = vsel %vm315, %v226, %v314
        %vm317 = vcmp.eq.s32.totalorder %v209, 3
        %v318 = vsel %vm317, %v247, %v316
        %vm319 = vcmp.eq.s32.totalorder %v209, 4
        %v320 = vsel %vm319, %v268, %v318
        %vm321 = vcmp.eq.s32.totalorder %v209, 5
        %v322 = vsel %vm321, %v289, %v320
        %vm323 = vcmp.eq.s32.totalorder %v209, 6
        %v324 = vsel %vm323, %v310, %v322
        %v325 = vld [vmem:[#allocation2] sm:$0xff]
        %vm326 = vcmask 64512
        %v328 = vsel %vm326, %v324, 0
        %330 = vmatprep.subr.mxu0 0.0
        %331 = vmatpush1.msra.mxu0 0.0
        %332 = vmatprep.subr.mxu0 0.0
        %333 = vmatpush1.msra.mxu0 0.0
        %334 = vmatprep.subr.mxu0 0.0
        %335 = vmatpush1.msra.mxu0 0.0
        %336 = vmatprep.subr.mxu0 0.0
        %337 = vmatpush1.msra.mxu0 0.0
        %338 = vmatprep.subr.mxu0 0.0
        %339 = vmatpush1.msra.mxu0 0.0
        %340 = vmatprep.subr.mxu0 0.0
        %341 = vmatpush1.msra.mxu0 0.0
        %342 = vmatprep.subr.mxu0 0.0
        %343 = vmatpush1.msra.mxu0 0.0
        %344 = vmatprep.subr.mxu0 0.0
        %345 = vmatpush1.msra.mxu0 0.0
        %346 = vmatprep.subr.mxu0 0.0
        %347 = vmatpush1.msra.mxu0 0.0
        %348 = vmatprep.subr.mxu0 0.0
        %349 = vmatpush1.msra.mxu0 0.0
        %350 = vmatprep.subr.mxu0 0.0
        %351 = vmatpush1.msra.mxu0 0.0
        %352 = vmatprep.subr.mxu0 0.0
        %353 = vmatpush1.msra.mxu0 0.0
        %354 = vmatprep.subr.mxu0 0.0
        %355 = vmatpush1.msra.mxu0 0.0
        %356 = vmatprep.subr.mxu0 0.0
        %357 = vmatpush1.msra.mxu0 0.0
        %358 = vmatprep.subr.mxu0 0.0
        %359 = vmatpush1.msra.mxu0 0.0
        %360 = vmatprep.subr.mxu0 0.0
        %361 = vmatpush1.msra.mxu0 %v325
        %362 = vmatprep.subr.mxu0 0.0
        %363 = vmatpush2.msra.mxu0 0.0
        %364 = vmatprep.subr.mxu0 0.0
        %365 = vmatpush2.msra.mxu0 0.0
        %366 = vmatprep.subr.mxu0 0.0
        %367 = vmatpush2.msra.mxu0 0.0
        %368 = vmatprep.subr.mxu0 0.0
        %369 = vmatpush2.msra.mxu0 0.0
        %370 = vmatprep.subr.mxu0 0.0
        %371 = vmatpush2.msra.mxu0 0.0
        %372 = vmatprep.subr.mxu0 0.0
        %373 = vmatpush2.msra.mxu0 0.0
        %374 = vmatprep.subr.mxu0 0.0
        %375 = vmatpush2.msra.mxu0 0.0
        %376 = vmatprep.subr.mxu0 0.0
        %377 = vmatpush2.msra.mxu0 0.0
        %378 = vmatprep.subr.mxu0 0.0
        %379 = vmatpush2.msra.mxu0 0.0
        %380 = vmatprep.subr.mxu0 0.0
        %381 = vmatpush2.msra.mxu0 0.0
        %382 = vmatprep.subr.mxu0 0.0
        %383 = vmatpush2.msra.mxu0 0.0
        %384 = vmatprep.subr.mxu0 0.0
        %385 = vmatpush2.msra.mxu0 0.0
        %386 = vmatprep.subr.mxu0 0.0
        %387 = vmatpush2.msra.mxu0 0.0
        %388 = vmatprep.subr.mxu0 0.0
        %389 = vmatpush2.msra.mxu0 0.0
        %390 = vmatprep.subr.mxu0 0.0
        %391 = vmatpush2.msra.mxu0 0.0
        %392 = vmatprep.subr.mxu0 0.0
        %393 = vmatpush2.msra.mxu0 0.0
        %394 = vmatprep.mubr.f32.mxu0 0.0
        %395 = vmatmul.mubr.f32.gmra.mxu0 %v328
        %v396 = vpop.f32.mrf.mxu0
        %v397 = vadd.f32 0.0, %v396
        %v398 = vpop.f32.mrf.mxu0
        %399 = vdwg.mxu0
        %vm400 = vcmask 261120
        %401 = vst.msk [vmem:[%s187] sm:$0xff] %vm400, %v397
        %s402 = sand.u32 %s99, 1
        %s403 = scalar_lea.sflag [#allocation4], %s402
        %s404 = sand.u32 %s99, 1
        %s405 = smul.addr %s404, 8
        %s406 = scalar_lea.vmem [#allocation5], %s405
        // Predicated region
        $region37: #{tpu_custom_call.1} parent=31 // pred_check
          %p407 = pneg %p109
        $region38: #{tpu_custom_call.1} parent=31 // pred_check_branch
          %409 = sbr.rel (%p407) target = $region40
        $region39: #{tpu_custom_call.1} parent=31 // pred_region
          %s411 = ssub.s32 128, 128
          %412 = vsyncadd %s403, %s411
          %s413 = smul.addr %s18, 128
          %s414 = scalar_lea.hbm %s3, %s413
          %s416 = sshll.u32 %s406, 4
          %s417 = int_to_ptr.vmem [resolvable:$true] %s416
          %419 = dma.vmem_to_hbm [thread:$0]  %s417, 128, %s414, %s403
        $region40: #{tpu_custom_call.1} parent=31 // pred_fallthru
          _
      $region32: #{tpu_custom_call.1} parent=5 // pred_fallthru
        _
      %p420 = scmp.le.s32.totalorder 2, %s13
      // Predicated region
      $region41: #{tpu_custom_call.1} parent=5 // pred_check
        %p421 = pneg %p420
      $region42: #{tpu_custom_call.1} parent=5 // pred_check_branch
        %423 = sbr.rel (%p421) target = $region44
      $region43: #{tpu_custom_call.1} parent=5 // pred_region
        %s424 = ssub.s32 %s13, 2
        // Predicated region
        $region45: #{tpu_custom_call.1} parent=43 // pred_check
          %p425 = pneg %p115
        $region46: #{tpu_custom_call.1} parent=43 // pred_check_branch
          %427 = sbr.rel (%p425) target = $region48
        $region47: #{tpu_custom_call.1} parent=43 // pred_region
          %s428 = sand.u32 %s100, 1
          %s429 = scalar_lea.sflag [#allocation4], %s428
          %s430 = sand.u32 %s100, 1
          %s431 = smul.addr %s430, 8
          %s432 = scalar_lea.vmem [#allocation5], %s431
          %433 = dma.done %s429, 128
        $region48: #{tpu_custom_call.1} parent=43 // pred_fallthru
          _
      $region44: #{tpu_custom_call.1} parent=5 // pred_fallthru
        _
    $region6: #{tpu_custom_call.1} parent=1 // loop_footer
      %s17 = sadd.s32 1, %s13
    $region7: #{tpu_custom_call.1} parent=1 // loop_footer_branch
      %12 = sbr.rel target = $region3
    $region8: #{tpu_custom_call.1} parent=1 // loop_exit
      _
    %434 = vsyncpa [#allocation3], 1
    %s435 = scalar_lea.sflag [#allocation3], 1
    %436 = vsyncpa %s435, 1
    %437 = vsyncpa [#allocation4], 1
    %s438 = scalar_lea.sflag [#allocation4], 1
    %439 = vsyncpa %s438, 1

</llo_original>
